<compile_context>
chip_gen: v6e
topology: v6e:2x2x1
jax: 0.10.0
libtpu: 0.0.40
codegen_flags: <defaults>
</compile_context>

<pallas_src>
import jax
import jax.numpy as jnp
from jax.experimental import pallas as pl
from jax.experimental.pallas import tpu as pltpu

K_EXP = 3      # num_exposures
C_IN = 1       # channels per exposure
HIDDEN = 32    # surrogate head width (matches SegHead head_width=32)


def ghosts_kernel(x_ref, w1b_ref, b1b_ref, w2b_ref, thr_ref, o_ref):
    # x_ref : (K, TH, TW)          spatial tile, natural (H, W)-minor layout
    # w1b   : (K, R*HIDDEN, R)     block-diagonal layer-1 weights (resident)
    # b1b   : (R*HIDDEN, 1)
    # w2b   : (R*K, R*HIDDEN)      block-diagonal layer-2 weights (resident)
    # thr   : (R*K, 1)             0.5 - b2  (bias folded into the threshold)
    # o_ref : (K, TH, TW)
    k_exp, th, tw = x_ref.shape
    r = w1b_ref.shape[-1]          # band height: 8, or H for tiny images
    nb = th // r                   # static number of row bands per tile

    w1cs = [w1b_ref[c] for c in range(k_exp)]   # (R*HIDDEN, R) each
    b1b = b1b_ref[...]
    w2b = w2b_ref[...]
    thr = thr_ref[...]

    @pl.loop(0, nb)
    def _(band):
        r0 = pl.multiple_of(band * r, r)
        # Layer 1 (1x1 conv, 3 -> 32) as a sum of rank-2 MXU matmuls over the
        # block-diagonal weights; no reshape of the (K, R, TW) pixel band.
        acc = jnp.dot(w1cs[0], x_ref[0, pl.ds(r0, r), :],
                      preferred_element_type=jnp.float32)
        for c in range(1, k_exp):
            acc = acc + jnp.dot(w1cs[c], x_ref[c, pl.ds(r0, r), :],
                                preferred_element_type=jnp.float32)
        h = jnp.maximum(acc + b1b, 0.0)                       # (R*HIDDEN, TW)
        # Layer 2 (1x1 conv, 32 -> 3); full-depth contraction on the MXU.
        pre = jnp.dot(w2b, h, preferred_element_type=jnp.float32)  # (R*K, TW)
        # masks[<=0.5]=0; masks[>0.5]=1; masks = 1-masks  => (pre+b2 > 0.5) -> 0
        mask = jnp.where(pre > thr, 0.0, 1.0).astype(o_ref.dtype)
        for k in range(k_exp):
            o_ref[k, pl.ds(r0, r), :] = mask[k * r:(k + 1) * r, :]


def _choose_tiles(H, W, *, target_px=32768, tw_cap=2048, min_grid_steps=1):
    """Spatial tile: lanes from W (multiple of 128 or full extent), sublanes
    from H (multiple of the band height R).  Target ~32K px per grid step so
    the ~0.35 us fixed per-step pipeline overhead hides under the DMA."""
    if W % 128 == 0:
        tw = min(W, tw_cap)            # lane-dense, multiple of 128
    elif W < tw_cap:
        tw = W                         # full extent: legal for any W
    else:
        tw = tw_cap                    # last W-block clipped by Pallas
    r = 8 if H >= 8 else H             # band height (sublane tile)
    th = max(r, (min(H, max(1, target_px // tw)) // r) * r)
    # Only useful on v7x (2 TensorCores): keep >= min_grid_steps row-band
    # steps so the parallel grid axis can be split across cores.  On v5e/v6e
    # (1 TC) extra steps are pure overhead, so the default is 1 (no cap).
    if min_grid_steps > 1 and (H // min_grid_steps) >= r:
        th = min(th, max(r, ((H // min_grid_steps) // r) * r))
    return th, tw, r


def ghosts_detector(exposures, w1, b1, w2, b2, *, target_px=32768, tw_cap=2048,
                    min_grid_steps=1, out_dtype=jnp.float32):
    """exposures: (K, C, H, W) f32 -> masks: (K, 1, H, W) with values in {0, 1}.

    out_dtype=jnp.float32 matches the PyTorch reference (float masks).  With
    the dense (K, H, W) output layout, jnp.int8 is now a genuine ~4x writeback
    reduction if the consumer can take integer masks directly.
    min_grid_steps: leave at 1 on v5e/v6e; ~8 on v7x for dual-TC splitting.
    """
    K, C, H, W = exposures.shape
    assert K == K_EXP and C == C_IN

    # Dropping the size-1 channel dim leaves the minor (H, W) dims untouched:
    # layout-free, no HBM relayout copy.
    x = jnp.squeeze(exposures, axis=1)                     # (K, H, W)

    th, tw, r = _choose_tiles(H, W, target_px=target_px, tw_cap=tw_cap,
                              min_grid_steps=min_grid_steps)

    # Block-diagonal (kron with eye(r)) weights: KB-scale, built once, resident.
    eye_r = jnp.eye(r, dtype=jnp.float32)
    w1b = jnp.stack([jnp.kron(w1[c][:, None], eye_r) for c in range(K)])  # (K, r*HIDDEN, r)
    b1b = jnp.repeat(jnp.reshape(b1, (-1,)), r)[:, None]                  # (r*HIDDEN, 1)
    w2b = jnp.kron(jnp.transpose(w2), eye_r)                              # (r*K, r*HIDDEN)
    thr = 0.5 - jnp.repeat(jnp.reshape(b2, (-1,)), r)[:, None]            # (r*K, 1)

    grid = (pl.cdiv(H, th), pl.cdiv(W, tw))
    out = pl.pallas_call(
        ghosts_kernel,
        out_shape=jax.ShapeDtypeStruct((K, H, W), out_dtype),
        grid=grid,
        in_specs=[
            pl.BlockSpec((K, th, tw), lambda i, j: (0, i, j)),         # pixel tile
            pl.BlockSpec((K, r * HIDDEN, r), lambda i, j: (0, 0, 0)),  # W1 blocks
            pl.BlockSpec((r * HIDDEN, 1), lambda i, j: (0, 0)),        # b1
            pl.BlockSpec((r * K, r * HIDDEN), lambda i, j: (0, 0)),    # W2 blocks
            pl.BlockSpec((r * K, 1), lambda i, j: (0, 0)),             # 0.5 - b2
        ],
        out_specs=pl.BlockSpec((K, th, tw), lambda i, j: (0, i, j)),
        compiler_params=pltpu.CompilerParams(
            dimension_semantics=("parallel", "parallel")),
    )(x, w1b, b1b, w2b, thr)

    # (K, H, W) -> (K, 1, H, W): size-1 dim insert, layout-free.
    return out[:, None, :, :]


if __name__ == "__main__":
    key = jax.random.PRNGKey(0)
    k_x, k_w1, k_b1, k_w2, k_b2 = jax.random.split(key, 5)

    K, C, H, W = K_EXP, C_IN, 16, 16
    exposures = jax.random.uniform(k_x, (K, C, H, W), dtype=jnp.float32)

    # Deterministic synthetic parameters (surrogate for the EfficientViT head).
    cin = K * C
    w1 = jax.random.normal(k_w1, (cin, HIDDEN), dtype=jnp.float32) * 0.5
    b1 = jax.random.normal(k_b1, (1, HIDDEN), dtype=jnp.float32) * 0.1
    w2 = jax.random.normal(k_w2, (HIDDEN, K), dtype=jnp.float32) * 0.5
    b2 = jax.random.normal(k_b2, (1, K), dtype=jnp.float32) * 0.1

    masks = jax.jit(ghosts_detector)(exposures, w1, b1, w2, b2)
    jax.block_until_ready(masks)

    assert masks.shape == (K, 1, H, W), masks.shape
    assert bool(jnp.all((masks == 0.0) | (masks == 1.0)))

    # Pure-JAX reference of the same surrogate head + threshold/invert.
    x_rows = jnp.transpose(exposures[:, 0], (1, 2, 0)).reshape(H * W, cin)
    logits = jnp.maximum(x_rows @ w1 + b1, 0.0) @ w2 + b2
    ref = jnp.where(logits > 0.5, 0.0, 1.0)
    ref = jnp.transpose(ref.reshape(H, W, K), (2, 0, 1))[:, None, :, :]
    # f32 matmul rounding (MXU vs XLA dot) can flip pixels whose logit sits
    # essentially on the 0.5 threshold; ignore those.
    near = jnp.abs(logits - 0.5) < 5e-2
    near = jnp.transpose(near.reshape(H, W, K), (2, 0, 1))[:, None, :, :]
    assert bool(jnp.all((masks == ref) | near))

    print("KERNEL_OK")
</pallas_src>

<mosaic_0001>
module attributes {stable_mosaic.version = 11 : i64} {
  func.func @ghosts_kernel(%arg0: i32, %arg1: i32, %arg2: memref<3x16x16xf32, #tpu.memory_space<vmem>>, %arg3: memref<3x256x8xf32, #tpu.memory_space<vmem>>, %arg4: memref<256x1xf32, #tpu.memory_space<vmem>>, %arg5: memref<24x256xf32, #tpu.memory_space<vmem>>, %arg6: memref<24x1xf32, #tpu.memory_space<vmem>>, %arg7: memref<3x16x16xf32, #tpu.memory_space<vmem>>) attributes {dimension_semantics = [#tpu.dimension_semantics<parallel>, #tpu.dimension_semantics<parallel>], iteration_bounds = array<i64: 1, 1>, scalar_prefetch = 0 : i64, scratch_operands = 0 : i64, tpu.core_type = #tpu.core_type<tc>, window_params = [{transform_indices = @transform_0, window_bounds = array<i64: 3, 16, 16>}, {pipeline_mode = #tpu.pipeline_mode<synchronous>, transform_indices = @transform_1, window_bounds = array<i64: 3, 256, 8>}, {pipeline_mode = #tpu.pipeline_mode<synchronous>, transform_indices = @transform_2, window_bounds = array<i64: 256, 1>}, {pipeline_mode = #tpu.pipeline_mode<synchronous>, transform_indices = @transform_3, window_bounds = array<i64: 24, 256>}, {pipeline_mode = #tpu.pipeline_mode<synchronous>, transform_indices = @transform_4, window_bounds = array<i64: 24, 1>}, {transform_indices = @transform_5, window_bounds = array<i64: 3, 16, 16>}]} {
    %c0 = arith.constant 0 : index
    %c0_0 = arith.constant 0 : index
    %c0_1 = arith.constant 0 : index
    %0 = vector.load %arg3[%c0, %c0_0, %c0_1] : memref<3x256x8xf32, #tpu.memory_space<vmem>>, vector<1x256x8xf32>
    %1 = vector.shape_cast %0 : vector<1x256x8xf32> to vector<256x8xf32>
    %c1 = arith.constant 1 : index
    %c0_2 = arith.constant 0 : index
    %c0_3 = arith.constant 0 : index
    %2 = vector.load %arg3[%c1, %c0_2, %c0_3] : memref<3x256x8xf32, #tpu.memory_space<vmem>>, vector<1x256x8xf32>
    %3 = vector.shape_cast %2 : vector<1x256x8xf32> to vector<256x8xf32>
    %c2 = arith.constant 2 : index
    %c0_4 = arith.constant 0 : index
    %c0_5 = arith.constant 0 : index
    %4 = vector.load %arg3[%c2, %c0_4, %c0_5] : memref<3x256x8xf32, #tpu.memory_space<vmem>>, vector<1x256x8xf32>
    %5 = vector.shape_cast %4 : vector<1x256x8xf32> to vector<256x8xf32>
    %c0_6 = arith.constant 0 : index
    %c0_7 = arith.constant 0 : index
    %6 = vector.load %arg4[%c0_6, %c0_7] : memref<256x1xf32, #tpu.memory_space<vmem>>, vector<256x1xf32>
    %c0_8 = arith.constant 0 : index
    %c0_9 = arith.constant 0 : index
    %7 = vector.load %arg5[%c0_8, %c0_9] : memref<24x256xf32, #tpu.memory_space<vmem>>, vector<24x256xf32>
    %c0_10 = arith.constant 0 : index
    %c0_11 = arith.constant 0 : index
    %8 = vector.load %arg6[%c0_10, %c0_11] : memref<24x1xf32, #tpu.memory_space<vmem>>, vector<24x1xf32>
    %c0_i32 = arith.constant 0 : i32
    %c2_i32 = arith.constant 2 : i32
    %9 = arith.addi %c0_i32, %c2_i32 : i32
    %c1_i32 = arith.constant 1 : i32
    scf.for %arg8 = %c0_i32 to %9 step %c1_i32  : i32 {
      %c1_i32_13 = arith.constant 1 : i32
      %10 = arith.muli %arg8, %c1_i32_13 : i32
      %c0_i32_14 = arith.constant 0 : i32
      %11 = arith.addi %c0_i32_14, %10 : i32
      %c8_i32 = arith.constant 8 : i32
      %12 = arith.muli %11, %c8_i32 : i32
      %13 = tpu.assume_multiple %12, 8 : i32
      %c0_15 = arith.constant 0 : index
      %14 = arith.index_cast %13 : i32 to index
      %c0_16 = arith.constant 0 : index
      %15 = vector.load %arg2[%c0_15, %14, %c0_16] : memref<3x16x16xf32, #tpu.memory_space<vmem>>, vector<1x8x16xf32>
      %16 = vector.shape_cast %15 : vector<1x8x16xf32> to vector<8x16xf32>
      %cst = arith.constant dense<0.000000e+00> : vector<256x16xf32>
      %17 = tpu.matmul %1, %16, %cst {dimension_numbers = #tpu.dot_dimension_numbers<[1], [0], [0], [1], [0, 0, 1, 1], [], []>} : vector<256x8xf32>, vector<8x16xf32>, vector<256x16xf32> -> vector<256x16xf32>
      %c1_17 = arith.constant 1 : index
      %18 = arith.index_cast %13 : i32 to index
      %c0_18 = arith.constant 0 : index
      %19 = vector.load %arg2[%c1_17, %18, %c0_18] : memref<3x16x16xf32, #tpu.memory_space<vmem>>, vector<1x8x16xf32>
      %20 = vector.shape_cast %19 : vector<1x8x16xf32> to vector<8x16xf32>
      %cst_19 = arith.constant dense<0.000000e+00> : vector<256x16xf32>
      %21 = tpu.matmul %3, %20, %cst_19 {dimension_numbers = #tpu.dot_dimension_numbers<[1], [0], [0], [1], [0, 0, 1, 1], [], []>} : vector<256x8xf32>, vector<8x16xf32>, vector<256x16xf32> -> vector<256x16xf32>
      %22 = arith.addf %17, %21 : vector<256x16xf32>
      %c2_20 = arith.constant 2 : index
      %23 = arith.index_cast %13 : i32 to index
      %c0_21 = arith.constant 0 : index
      %24 = vector.load %arg2[%c2_20, %23, %c0_21] : memref<3x16x16xf32, #tpu.memory_space<vmem>>, vector<1x8x16xf32>
      %25 = vector.shape_cast %24 : vector<1x8x16xf32> to vector<8x16xf32>
      %cst_22 = arith.constant dense<0.000000e+00> : vector<256x16xf32>
      %26 = tpu.matmul %5, %25, %cst_22 {dimension_numbers = #tpu.dot_dimension_numbers<[1], [0], [0], [1], [0, 0, 1, 1], [], []>} : vector<256x8xf32>, vector<8x16xf32>, vector<256x16xf32> -> vector<256x16xf32>
      %27 = arith.addf %22, %26 : vector<256x16xf32>
      %28 = vector.broadcast %6 : vector<256x1xf32> to vector<256x16xf32>
      %29 = arith.addf %27, %28 : vector<256x16xf32>
      %cst_23 = arith.constant 0.000000e+00 : f32
      %30 = vector.broadcast %cst_23 : f32 to vector<256x16xf32>
      %31 = arith.maximumf %29, %30 : vector<256x16xf32>
      %cst_24 = arith.constant dense<0.000000e+00> : vector<24x16xf32>
      %32 = tpu.matmul %7, %31, %cst_24 {dimension_numbers = #tpu.dot_dimension_numbers<[1], [0], [0], [1], [0, 0, 1, 1], [], []>} : vector<24x256xf32>, vector<256x16xf32>, vector<24x16xf32> -> vector<24x16xf32>
      %33 = vector.broadcast %8 : vector<24x1xf32> to vector<24x16xf32>
      %34 = arith.cmpf ogt, %32, %33 : vector<24x16xf32>
      %cst_25 = arith.constant 0.000000e+00 : f32
      %cst_26 = arith.constant 1.000000e+00 : f32
      %35 = vector.broadcast %cst_25 : f32 to vector<24x16xf32>
      %36 = vector.broadcast %cst_26 : f32 to vector<24x16xf32>
      %37 = arith.select %34, %35, %36 : vector<24x16xi1>, vector<24x16xf32>
      %38 = vector.extract_strided_slice %37 {offsets = [0, 0], sizes = [8, 16], strides = [1, 1]} : vector<24x16xf32> to vector<8x16xf32>
      %c0_27 = arith.constant 0 : index
      %39 = arith.index_cast %13 : i32 to index
      %c0_28 = arith.constant 0 : index
      %40 = vector.load %arg7[%c0_27, %39, %c0_28] : memref<3x16x16xf32, #tpu.memory_space<vmem>>, vector<1x8x16xf32>
      %41 = vector.shape_cast %40 : vector<1x8x16xf32> to vector<8x16xf32>
      %42 = vector.shape_cast %38 : vector<8x16xf32> to vector<1x8x16xf32>
      tpu.vector_store %arg7[%c0_27, %39, %c0_28], %42 {strides = array<i32>} : memref<3x16x16xf32, #tpu.memory_space<vmem>>, vector<1x8x16xf32>,
      %43 = vector.extract_strided_slice %37 {offsets = [8, 0], sizes = [8, 16], strides = [1, 1]} : vector<24x16xf32> to vector<8x16xf32>
      %c1_29 = arith.constant 1 : index
      %44 = arith.index_cast %13 : i32 to index
      %c0_30 = arith.constant 0 : index
      %45 = vector.load %arg7[%c1_29, %44, %c0_30] : memref<3x16x16xf32, #tpu.memory_space<vmem>>, vector<1x8x16xf32>
      %46 = vector.shape_cast %45 : vector<1x8x16xf32> to vector<8x16xf32>
      %47 = vector.shape_cast %43 : vector<8x16xf32> to vector<1x8x16xf32>
      tpu.vector_store %arg7[%c1_29, %44, %c0_30], %47 {strides = array<i32>} : memref<3x16x16xf32, #tpu.memory_space<vmem>>, vector<1x8x16xf32>,
      %48 = vector.extract_strided_slice %37 {offsets = [16, 0], sizes = [8, 16], strides = [1, 1]} : vector<24x16xf32> to vector<8x16xf32>
      %c2_31 = arith.constant 2 : index
      %49 = arith.index_cast %13 : i32 to index
      %c0_32 = arith.constant 0 : index
      %50 = vector.load %arg7[%c2_31, %49, %c0_32] : memref<3x16x16xf32, #tpu.memory_space<vmem>>, vector<1x8x16xf32>
      %51 = vector.shape_cast %50 : vector<1x8x16xf32> to vector<8x16xf32>
      %52 = vector.shape_cast %48 : vector<8x16xf32> to vector<1x8x16xf32>
      tpu.vector_store %arg7[%c2_31, %49, %c0_32], %52 {strides = array<i32>} : memref<3x16x16xf32, #tpu.memory_space<vmem>>, vector<1x8x16xf32>,
    }
    %c2_i32_12 = arith.constant 2 : i32
    return
  }
  func.func @transform_0(%arg0: i32, %arg1: i32) -> (i32, i32, i32) {
    %c0_i32 = arith.constant 0 : i32
    %c0_i32_0 = arith.constant 0 : i32
    return %c0_i32, %arg0, %arg1 : i32, i32, i32
  }
  func.func @transform_1(%arg0: i32, %arg1: i32) -> (i32, i32, i32) {
    %c0_i32 = arith.constant 0 : i32
    %c0_i32_0 = arith.constant 0 : i32
    %c0_i32_1 = arith.constant 0 : i32
    %c0_i32_2 = arith.constant 0 : i32
    return %c0_i32, %c0_i32_0, %c0_i32_1 : i32, i32, i32
  }
  func.func @transform_2(%arg0: i32, %arg1: i32) -> (i32, i32) {
    %c0_i32 = arith.constant 0 : i32
    %c0_i32_0 = arith.constant 0 : i32
    %c0_i32_1 = arith.constant 0 : i32
    return %c0_i32, %c0_i32_0 : i32, i32
  }
  func.func @transform_3(%arg0: i32, %arg1: i32) -> (i32, i32) {
    %c0_i32 = arith.constant 0 : i32
    %c0_i32_0 = arith.constant 0 : i32
    %c0_i32_1 = arith.constant 0 : i32
    return %c0_i32, %c0_i32_0 : i32, i32
  }
  func.func @transform_4(%arg0: i32, %arg1: i32) -> (i32, i32) {
    %c0_i32 = arith.constant 0 : i32
    %c0_i32_0 = arith.constant 0 : i32
    %c0_i32_1 = arith.constant 0 : i32
    return %c0_i32, %c0_i32_0 : i32, i32
  }
  func.func @transform_5(%arg0: i32, %arg1: i32) -> (i32, i32, i32) {
    %c0_i32 = arith.constant 0 : i32
    %c0_i32_0 = arith.constant 0 : i32
    return %c0_i32, %arg0, %arg1 : i32, i32, i32
  }
}

</mosaic_0001>

<llo_original>
// kernel: ghosts_detector.1
$region0: #{ghosts_detector.1}
  #allocation0 [shape = 'u32[]', space=smem, size = 0x4, offset = 0x4, fixed_abs, tag = 'smem constant byte address 0x4 - core index']
  #allocation1 [shape = 'u32[144,128]{1,0:T(1,128)}', space=vmem, size = 0x12000, scoped, tag = 'internal scratch']
  %s0 = inlined_call_operand.vmem [shape: f32[3,16,16], index: 0, kind: input, shape index: {}]
  %s1 = inlined_call_operand.vmem [shape: f32[3,256,8], index: 1, kind: input, shape index: {}]
  %s2 = inlined_call_operand.vmem [shape: f32[256,1], index: 2, kind: input, shape index: {}]
  %s3 = inlined_call_operand.vmem [shape: f32[24,256], index: 3, kind: input, shape index: {}]
  %s4 = inlined_call_operand.vmem [shape: f32[24,1], index: 4, kind: input, shape index: {}]
  %s5 = inlined_call_operand.hbm [shape: f32[3,16,16], index: 5, kind: output, shape index: {}]
  %s6 = sld [smem:[#allocation0]]
  $region37: #{ghosts_detector.1} parent=0
    _
  %s8 = ssub.s32 1, %s6
  %s9 = scalar_select 0, %s8, %s6
  $region1: #{ghosts_detector.1} parent=0
    #allocation2 [shape = 'u8[24576]{0}', space=vmem, size = 0x6000, scoped, tag = 'output window, operand 0, single buffered']
    #allocation3 [shape = 's32[1]{0}', space=sflag, size = 0x4, scoped, tag = 'scoped memory for ghosts_detector.1']
    %10 = vsyncpa [#allocation3], 0
    // Predicated region
    $region2: #{ghosts_detector.1} parent=1 // pred_check
      _
    $region3: #{ghosts_detector.1} parent=1 // pred_check_branch
      %12 = sbr.rel (0) target = $region5
    $region4: #{ghosts_detector.1} parent=1 // pred_region
      _
    $region5: #{ghosts_detector.1} parent=1 // pred_fallthru
      _
    // Predicated region
    $region6: #{ghosts_detector.1} parent=1 // pred_check
      _
    $region7: #{ghosts_detector.1} parent=1 // pred_check_branch
      %14 = sbr.rel (0) target = $region9
    $region8: #{ghosts_detector.1} parent=1 // pred_region
      _
    $region9: #{ghosts_detector.1} parent=1 // pred_fallthru
      _
    // Predicated region
    $region10: #{ghosts_detector.1} parent=1 // pred_check
      _
    $region11: #{ghosts_detector.1} parent=1 // pred_check_branch
      %16 = sbr.rel (0) target = $region13
    $region12: #{ghosts_detector.1} parent=1 // pred_region
      _
    $region13: #{ghosts_detector.1} parent=1 // pred_fallthru
      _
    // Predicated region
    $region14: #{ghosts_detector.1} parent=1 // pred_check
      _
    $region15: #{ghosts_detector.1} parent=1 // pred_check_branch
      %18 = sbr.rel (0) target = $region17
    $region16: #{ghosts_detector.1} parent=1 // pred_region
      _
    $region17: #{ghosts_detector.1} parent=1 // pred_fallthru
      _
    // Predicated region
    $region18: #{ghosts_detector.1} parent=1 // pred_check
      _
    $region19: #{ghosts_detector.1} parent=1 // pred_check_branch
      %20 = sbr.rel (0) target = $region21
    $region20: #{ghosts_detector.1} parent=1 // pred_region
      _
    $region21: #{ghosts_detector.1} parent=1 // pred_fallthru
      _
    %v21 = vld [vmem:[%s1] sm:$0xff]
    %v22 = vld [vmem:[%s1 + $0x8] sm:$0xff]
    %v23 = vld [vmem:[%s1 + $0x10] sm:$0xff]
    %v24 = vld [vmem:[%s1 + $0x18] sm:$0xff]
    %v25 = vld [vmem:[%s1 + $0x20] sm:$0xff]
    %v26 = vld [vmem:[%s1 + $0x28] sm:$0xff]
    %v27 = vld [vmem:[%s1 + $0x30] sm:$0xff]
    %v28 = vld [vmem:[%s1 + $0x38] sm:$0xff]
    %v29 = vld [vmem:[%s1 + $0x40] sm:$0xff]
    %v30 = vld [vmem:[%s1 + $0x48] sm:$0xff]
    %v31 = vld [vmem:[%s1 + $0x50] sm:$0xff]
    %v32 = vld [vmem:[%s1 + $0x58] sm:$0xff]
    %v33 = vld [vmem:[%s1 + $0x60] sm:$0xff]
    %v34 = vld [vmem:[%s1 + $0x68] sm:$0xff]
    %v35 = vld [vmem:[%s1 + $0x70] sm:$0xff]
    %v36 = vld [vmem:[%s1 + $0x78] sm:$0xff]
    %v37 = vld [vmem:[%s1 + $0x80] sm:$0xff]
    %v38 = vld [vmem:[%s1 + $0x88] sm:$0xff]
    %v39 = vld [vmem:[%s1 + $0x90] sm:$0xff]
    %v40 = vld [vmem:[%s1 + $0x98] sm:$0xff]
    %v41 = vld [vmem:[%s1 + $0xa0] sm:$0xff]
    %v42 = vld [vmem:[%s1 + $0xa8] sm:$0xff]
    %v43 = vld [vmem:[%s1 + $0xb0] sm:$0xff]
    %v44 = vld [vmem:[%s1 + $0xb8] sm:$0xff]
    %v45 = vld [vmem:[%s1 + $0xc0] sm:$0xff]
    %v46 = vld [vmem:[%s1 + $0xc8] sm:$0xff]
    %v47 = vld [vmem:[%s1 + $0xd0] sm:$0xff]
    %v48 = vld [vmem:[%s1 + $0xd8] sm:$0xff]
    %v49 = vld [vmem:[%s1 + $0xe0] sm:$0xff]
    %v50 = vld [vmem:[%s1 + $0xe8] sm:$0xff]
    %v51 = vld [vmem:[%s1 + $0xf0] sm:$0xff]
    %v52 = vld [vmem:[%s1 + $0xf8] sm:$0xff]
    %s53 = scalar_lea.vmem %s1, 256
    %v54 = vld [vmem:[%s53] sm:$0xff]
    %v55 = vld [vmem:[%s53 + $0x8] sm:$0xff]
    %v56 = vld [vmem:[%s53 + $0x10] sm:$0xff]
    %v57 = vld [vmem:[%s53 + $0x18] sm:$0xff]
    %v58 = vld [vmem:[%s53 + $0x20] sm:$0xff]
    %v59 = vld [vmem:[%s53 + $0x28] sm:$0xff]
    %v60 = vld [vmem:[%s53 + $0x30] sm:$0xff]
    %v61 = vld [vmem:[%s53 + $0x38] sm:$0xff]
    %v62 = vld [vmem:[%s53 + $0x40] sm:$0xff]
    %v63 = vld [vmem:[%s53 + $0x48] sm:$0xff]
    %v64 = vld [vmem:[%s53 + $0x50] sm:$0xff]
    %v65 = vld [vmem:[%s53 + $0x58] sm:$0xff]
    %v66 = vld [vmem:[%s53 + $0x60] sm:$0xff]
    %v67 = vld [vmem:[%s53 + $0x68] sm:$0xff]
    %v68 = vld [vmem:[%s53 + $0x70] sm:$0xff]
    %v69 = vld [vmem:[%s53 + $0x78] sm:$0xff]
    %v70 = vld [vmem:[%s53 + $0x80] sm:$0xff]
    %v71 = vld [vmem:[%s53 + $0x88] sm:$0xff]
    %v72 = vld [vmem:[%s53 + $0x90] sm:$0xff]
    %v73 = vld [vmem:[%s53 + $0x98] sm:$0xff]
    %v74 = vld [vmem:[%s53 + $0xa0] sm:$0xff]
    %v75 = vld [vmem:[%s53 + $0xa8] sm:$0xff]
    %v76 = vld [vmem:[%s53 + $0xb0] sm:$0xff]
    %v77 = vld [vmem:[%s53 + $0xb8] sm:$0xff]
    %v78 = vld [vmem:[%s53 + $0xc0] sm:$0xff]
    %v79 = vld [vmem:[%s53 + $0xc8] sm:$0xff]
    %v80 = vld [vmem:[%s53 + $0xd0] sm:$0xff]
    %v81 = vld [vmem:[%s53 + $0xd8] sm:$0xff]
    %v82 = vld [vmem:[%s53 + $0xe0] sm:$0xff]
    %v83 = vld [vmem:[%s53 + $0xe8] sm:$0xff]
    %v84 = vld [vmem:[%s53 + $0xf0] sm:$0xff]
    %v85 = vld [vmem:[%s53 + $0xf8] sm:$0xff]
    %s86 = scalar_lea.vmem %s1, 512
    %v87 = vld [vmem:[%s86] sm:$0xff]
    %v88 = vld [vmem:[%s86 + $0x8] sm:$0xff]
    %v89 = vld [vmem:[%s86 + $0x10] sm:$0xff]
    %v90 = vld [vmem:[%s86 + $0x18] sm:$0xff]
    %v91 = vld [vmem:[%s86 + $0x20] sm:$0xff]
    %v92 = vld [vmem:[%s86 + $0x28] sm:$0xff]
    %v93 = vld [vmem:[%s86 + $0x30] sm:$0xff]
    %v94 = vld [vmem:[%s86 + $0x38] sm:$0xff]
    %v95 = vld [vmem:[%s86 + $0x40] sm:$0xff]
    %v96 = vld [vmem:[%s86 + $0x48] sm:$0xff]
    %v97 = vld [vmem:[%s86 + $0x50] sm:$0xff]
    %v98 = vld [vmem:[%s86 + $0x58] sm:$0xff]
    %v99 = vld [vmem:[%s86 + $0x60] sm:$0xff]
    %v100 = vld [vmem:[%s86 + $0x68] sm:$0xff]
    %v101 = vld [vmem:[%s86 + $0x70] sm:$0xff]
    %v102 = vld [vmem:[%s86 + $0x78] sm:$0xff]
    %v103 = vld [vmem:[%s86 + $0x80] sm:$0xff]
    %v104 = vld [vmem:[%s86 + $0x88] sm:$0xff]
    %v105 = vld [vmem:[%s86 + $0x90] sm:$0xff]
    %v106 = vld [vmem:[%s86 + $0x98] sm:$0xff]
    %v107 = vld [vmem:[%s86 + $0xa0] sm:$0xff]
    %v108 = vld [vmem:[%s86 + $0xa8] sm:$0xff]
    %v109 = vld [vmem:[%s86 + $0xb0] sm:$0xff]
    %v110 = vld [vmem:[%s86 + $0xb8] sm:$0xff]
    %v111 = vld [vmem:[%s86 + $0xc0] sm:$0xff]
    %v112 = vld [vmem:[%s86 + $0xc8] sm:$0xff]
    %v113 = vld [vmem:[%s86 + $0xd0] sm:$0xff]
    %v114 = vld [vmem:[%s86 + $0xd8] sm:$0xff]
    %v115 = vld [vmem:[%s86 + $0xe0] sm:$0xff]
    %v116 = vld [vmem:[%s86 + $0xe8] sm:$0xff]
    %v117 = vld [vmem:[%s86 + $0xf0] sm:$0xff]
    %v118 = vld [vmem:[%s86 + $0xf8] sm:$0xff]
    %v119 = vld [vmem:[%s2] sm:$0xff]
    %v120 = vld [vmem:[%s2 + $0x8] sm:$0xff]
    %v121 = vld [vmem:[%s2 + $0x10] sm:$0xff]
    %v122 = vld [vmem:[%s2 + $0x18] sm:$0xff]
    %v123 = vld [vmem:[%s2 + $0x20] sm:$0xff]
    %v124 = vld [vmem:[%s2 + $0x28] sm:$0xff]
    %v125 = vld [vmem:[%s2 + $0x30] sm:$0xff]
    %v126 = vld [vmem:[%s2 + $0x38] sm:$0xff]
    %v127 = vld [vmem:[%s2 + $0x40] sm:$0xff]
    %v128 = vld [vmem:[%s2 + $0x48] sm:$0xff]
    %v129 = vld [vmem:[%s2 + $0x50] sm:$0xff]
    %v130 = vld [vmem:[%s2 + $0x58] sm:$0xff]
    %v131 = vld [vmem:[%s2 + $0x60] sm:$0xff]
    %v132 = vld [vmem:[%s2 + $0x68] sm:$0xff]
    %v133 = vld [vmem:[%s2 + $0x70] sm:$0xff]
    %v134 = vld [vmem:[%s2 + $0x78] sm:$0xff]
    %v135 = vld [vmem:[%s2 + $0x80] sm:$0xff]
    %v136 = vld [vmem:[%s2 + $0x88] sm:$0xff]
    %v137 = vld [vmem:[%s2 + $0x90] sm:$0xff]
    %v138 = vld [vmem:[%s2 + $0x98] sm:$0xff]
    %v139 = vld [vmem:[%s2 + $0xa0] sm:$0xff]
    %v140 = vld [vmem:[%s2 + $0xa8] sm:$0xff]
    %v141 = vld [vmem:[%s2 + $0xb0] sm:$0xff]
    %v142 = vld [vmem:[%s2 + $0xb8] sm:$0xff]
    %v143 = vld [vmem:[%s2 + $0xc0] sm:$0xff]
    %v144 = vld [vmem:[%s2 + $0xc8] sm:$0xff]
    %v145 = vld [vmem:[%s2 + $0xd0] sm:$0xff]
    %v146 = vld [vmem:[%s2 + $0xd8] sm:$0xff]
    %v147 = vld [vmem:[%s2 + $0xe0] sm:$0xff]
    %v148 = vld [vmem:[%s2 + $0xe8] sm:$0xff]
    %v149 = vld [vmem:[%s2 + $0xf0] sm:$0xff]
    %v150 = vld [vmem:[%s2 + $0xf8] sm:$0xff]
    %v151 = vld [vmem:[%s3] sm:$0xff]
    %v152 = vld [vmem:[%s3 + $0x8] sm:$0xff]
    %v153 = vld [vmem:[%s3 + $0x10] sm:$0xff]
    %v154 = vld [vmem:[%s3 + $0x18] sm:$0xff]
    %v155 = vld [vmem:[%s3 + $0x20] sm:$0xff]
    %v156 = vld [vmem:[%s3 + $0x28] sm:$0xff]
    %v157 = vld [vmem:[%s4] sm:$0xff]
    %v158 = vld [vmem:[%s4 + $0x8] sm:$0xff]
    %v159 = vld [vmem:[%s4 + $0x10] sm:$0xff]
    loop: start=0, step=1, limit=2
    $region22: #{ghosts_detector.1} parent=1 // loop_pre_header
      _
    $region23: #{ghosts_detector.1} parent=1 // loop_header
      %s161 = sphi 0, %s165
      %p162 = scmp.ge.s32.totalorder %s161, 2
    $region24: #{ghosts_detector.1} parent=1 // loop_header_branch
      %164 = sbr.rel (%p162) target = $region28
    $region25: #{ghosts_detector.1} parent=1 // loop_body
      %s166 = smul.u32 %s161, 8
      %s167 = scalar_lea.vmem %s0, %s166
      %v168 = vld [vmem:[%s167] sm:$0xff]
      %s169 = sadd.s32 %s166, 16
      %s170 = scalar_lea.vmem %s0, %s169
      %v171 = vld [vmem:[%s170] sm:$0xff]
      %vm172 = vcmask 64512
      %v174 = vsel %vm172, %v54, 0
      %v177 = vsel %vm172, %v55, 0
      %v180 = vsel %vm172, %v56, 0
      %v183 = vsel %vm172, %v57, 0
      %v186 = vsel %vm172, %v58, 0
      %v189 = vsel %vm172, %v59, 0
      %v192 = vsel %vm172, %v60, 0
      %v195 = vsel %vm172, %v61, 0
      %v198 = vsel %vm172, %v62, 0
      %v201 = vsel %vm172, %v63, 0
      %v204 = vsel %vm172, %v64, 0
      %v207 = vsel %vm172, %v65, 0
      %v210 = vsel %vm172, %v66, 0
      %v213 = vsel %vm172, %v67, 0
      %v216 = vsel %vm172, %v68, 0
      %v219 = vsel %vm172, %v69, 0
      %v222 = vsel %vm172, %v70, 0
      %v225 = vsel %vm172, %v71, 0
      %v228 = vsel %vm172, %v72, 0
      %v231 = vsel %vm172, %v73, 0
      %v234 = vsel %vm172, %v74, 0
      %v237 = vsel %vm172, %v75, 0
      %v240 = vsel %vm172, %v76, 0
      %v243 = vsel %vm172, %v77, 0
      %v246 = vsel %vm172, %v78, 0
      %v249 = vsel %vm172, %v79, 0
      %v252 = vsel %vm172, %v80, 0
      %v255 = vsel %vm172, %v81, 0
      %v258 = vsel %vm172, %v82, 0
      %v261 = vsel %vm172, %v83, 0
      %v264 = vsel %vm172, %v84, 0
      %v267 = vsel %vm172, %v85, 0
      %269 = vmatprep.subr.mxu0 0.0
      %270 = vmatpush1.msra.mxu0 0.0
      %271 = vmatprep.subr.mxu0 0.0
      %272 = vmatpush1.msra.mxu0 0.0
      %273 = vmatprep.subr.mxu0 0.0
      %274 = vmatpush1.msra.mxu0 0.0
      %275 = vmatprep.subr.mxu0 0.0
      %276 = vmatpush1.msra.mxu0 0.0
      %277 = vmatprep.subr.mxu0 0.0
      %278 = vmatpush1.msra.mxu0 0.0
      %279 = vmatprep.subr.mxu0 0.0
      %280 = vmatpush1.msra.mxu0 0.0
      %281 = vmatprep.subr.mxu0 0.0
      %282 = vmatpush1.msra.mxu0 0.0
      %283 = vmatprep.subr.mxu0 0.0
      %284 = vmatpush1.msra.mxu0 0.0
      %285 = vmatprep.subr.mxu0 0.0
      %286 = vmatpush1.msra.mxu0 0.0
      %287 = vmatprep.subr.mxu0 0.0
      %288 = vmatpush1.msra.mxu0 0.0
      %289 = vmatprep.subr.mxu0 0.0
      %290 = vmatpush1.msra.mxu0 0.0
      %291 = vmatprep.subr.mxu0 0.0
      %292 = vmatpush1.msra.mxu0 0.0
      %293 = vmatprep.subr.mxu0 0.0
      %294 = vmatpush1.msra.mxu0 0.0
      %295 = vmatprep.subr.mxu0 0.0
      %296 = vmatpush1.msra.mxu0 0.0
      %297 = vmatprep.subr.mxu0 0.0
      %298 = vmatpush1.msra.mxu0 0.0
      %299 = vmatprep.subr.mxu0 0.0
      %300 = vmatpush1.msra.mxu0 %v171
      %301 = vmatprep.subr.mxu0 0.0
      %302 = vmatpush2.msra.mxu0 0.0
      %303 = vmatprep.subr.mxu0 0.0
      %304 = vmatpush2.msra.mxu0 0.0
      %305 = vmatprep.subr.mxu0 0.0
      %306 = vmatpush2.msra.mxu0 0.0
      %307 = vmatprep.subr.mxu0 0.0
      %308 = vmatpush2.msra.mxu0 0.0
      %309 = vmatprep.subr.mxu0 0.0
      %310 = vmatpush2.msra.mxu0 0.0
      %311 = vmatprep.subr.mxu0 0.0
      %312 = vmatpush2.msra.mxu0 0.0
      %313 = vmatprep.subr.mxu0 0.0
      %314 = vmatpush2.msra.mxu0 0.0
      %315 = vmatprep.subr.mxu0 0.0
      %316 = vmatpush2.msra.mxu0 0.0
      %317 = vmatprep.subr.mxu0 0.0
      %318 = vmatpush2.msra.mxu0 0.0
      %319 = vmatprep.subr.mxu0 0.0
      %320 = vmatpush2.msra.mxu0 0.0
      %321 = vmatprep.subr.mxu0 0.0
      %322 = vmatpush2.msra.mxu0 0.0
      %323 = vmatprep.subr.mxu0 0.0
      %324 = vmatpush2.msra.mxu0 0.0
      %325 = vmatprep.subr.mxu0 0.0
      %326 = vmatpush2.msra.mxu0 0.0
      %327 = vmatprep.subr.mxu0 0.0
      %328 = vmatpush2.msra.mxu0 0.0
      %329 = vmatprep.subr.mxu0 0.0
      %330 = vmatpush2.msra.mxu0 0.0
      %331 = vmatprep.subr.mxu0 0.0
      %332 = vmatpush2.msra.mxu0 0.0
      %333 = vmatprep.mubr.f32.mxu0 0.0
      %334 = vmatmul.mubr.f32.gmra.mxu0 %v174
      %v335 = vpop.f32.mrf.mxu0
      %v336 = vadd.f32 0.0, %v335
      %v337 = vpop.f32.mrf.mxu0
      %338 = vmatprep.mubr.f32.mxu0 0.0
      %339 = vmatmul.mubr.f32.gmra.mxu0 %v177
      %v340 = vpop.f32.mrf.mxu0
      %v341 = vadd.f32 0.0, %v340
      %v342 = vpop.f32.mrf.mxu0
      %343 = vmatprep.mubr.f32.mxu0 0.0
      %344 = vmatmul.mubr.f32.gmra.mxu0 %v180
      %v345 = vpop.f32.mrf.mxu0
      %v346 = vadd.f32 0.0, %v345
      %v347 = vpop.f32.mrf.mxu0
      %348 = vmatprep.mubr.f32.mxu0 0.0
      %349 = vmatmul.mubr.f32.gmra.mxu0 %v183
      %v350 = vpop.f32.mrf.mxu0
      %v351 = vadd.f32 0.0, %v350
      %v352 = vpop.f32.mrf.mxu0
      %353 = vmatprep.mubr.f32.mxu0 0.0
      %354 = vmatmul.mubr.f32.gmra.mxu0 %v186
      %v355 = vpop.f32.mrf.mxu0
      %v356 = vadd.f32 0.0, %v355
      %v357 = vpop.f32.mrf.mxu0
      %358 = vmatprep.mubr.f32.mxu0 0.0
      %359 = vmatmul.mubr.f32.gmra.mxu0 %v189
      %v360 = vpop.f32.mrf.mxu0
      %v361 = vadd.f32 0.0, %v360
      %v362 = vpop.f32.mrf.mxu0
      %363 = vmatprep.mubr.f32.mxu0 0.0
      %364 = vmatmul.mubr.f32.gmra.mxu0 %v192
      %v365 = vpop.f32.mrf.mxu0
      %v366 = vadd.f32 0.0, %v365
      %v367 = vpop.f32.mrf.mxu0
      %368 = vmatprep.mubr.f32.mxu0 0.0
      %369 = vmatmul.mubr.f32.gmra.mxu0 %v195
      %v370 = vpop.f32.mrf.mxu0
      %v371 = vadd.f32 0.0, %v370
      %v372 = vpop.f32.mrf.mxu0
      %373 = vmatprep.mubr.f32.mxu0 0.0
      %374 = vmatmul.mubr.f32.gmra.mxu0 %v198
      %v375 = vpop.f32.mrf.mxu0
      %v376 = vadd.f32 0.0, %v375
      %v377 = vpop.f32.mrf.mxu0
      %378 = vmatprep.mubr.f32.mxu0 0.0
      %379 = vmatmul.mubr.f32.gmra.mxu0 %v201
      %v380 = vpop.f32.mrf.mxu0
      %v381 = vadd.f32 0.0, %v380
      %v382 = vpop.f32.mrf.mxu0
      %383 = vmatprep.mubr.f32.mxu0 0.0
      %384 = vmatmul.mubr.f32.gmra.mxu0 %v204
      %v385 = vpop.f32.mrf.mxu0
      %v386 = vadd.f32 0.0, %v385
      %v387 = vpop.f32.mrf.mxu0
      %388 = vmatprep.mubr.f32.mxu0 0.0
      %389 = vmatmul.mubr.f32.gmra.mxu0 %v207
      %v390 = vpop.f32.mrf.mxu0
      %v391 = vadd.f32 0.0, %v390
      %v392 = vpop.f32.mrf.mxu0
      %393 = vmatprep.mubr.f32.mxu0 0.0
      %394 = vmatmul.mubr.f32.gmra.mxu0 %v210
      %v395 = vpop.f32.mrf.mxu0
      %v396 = vadd.f32 0.0, %v395
      %v397 = vpop.f32.mrf.mxu0
      %398 = vmatprep.mubr.f32.mxu0 0.0
      %399 = vmatmul.mubr.f32.gmra.mxu0 %v213
      %v400 = vpop.f32.mrf.mxu0
      %v401 = vadd.f32 0.0, %v400
      %v402 = vpop.f32.mrf.mxu0
      %403 = vmatprep.mubr.f32.mxu0 0.0
      %404 = vmatmul.mubr.f32.gmra.mxu0 %v216
      %v405 = vpop.f32.mrf.mxu0
      %v406 = vadd.f32 0.0, %v405
      %v407 = vpop.f32.mrf.mxu0
      %408 = vmatprep.mubr.f32.mxu0 0.0
      %409 = vmatmul.mubr.f32.gmra.mxu0 %v219
      %v410 = vpop.f32.mrf.mxu0
      %v411 = vadd.f32 0.0, %v410
      %v412 = vpop.f32.mrf.mxu0
      %413 = vmatprep.mubr.f32.mxu0 0.0
      %414 = vmatmul.mubr.f32.gmra.mxu0 %v222
      %v415 = vpop.f32.mrf.mxu0
      %v416 = vadd.f32 0.0, %v415
      %v417 = vpop.f32.mrf.mxu0
      %418 = vmatprep.mubr.f32.mxu0 0.0
      %419 = vmatmul.mubr.f32.gmra.mxu0 %v225
      %v420 = vpop.f32.mrf.mxu0
      %v421 = vadd.f32 0.0, %v420
      %v422 = vpop.f32.mrf.mxu0
      %423 = vmatprep.mubr.f32.mxu0 0.0
      %424 = vmatmul.mubr.f32.gmra.mxu0 %v228
      %v425 = vpop.f32.mrf.mxu0
      %v426 = vadd.f32 0.0, %v425
      %v427 = vpop.f32.mrf.mxu0
      %428 = vmatprep.mubr.f32.mxu0 0.0
      %429 = vmatmul.mubr.f32.gmra.mxu0 %v231
      %v430 = vpop.f32.mrf.mxu0
      %v431 = vadd.f32 0.0, %v430
      %v432 = vpop.f32.mrf.mxu0
      %433 = vmatprep.mubr.f32.mxu0 0.0
      %434 = vmatmul.mubr.f32.gmra.mxu0 %v234
      %v435 = vpop.f32.mrf.mxu0
      %v436 = vadd.f32 0.0, %v435
      %v437 = vpop.f32.mrf.mxu0
      %438 = vmatprep.mubr.f32.mxu0 0.0
      %439 = vmatmul.mubr.f32.gmra.mxu0 %v237
      %v440 = vpop.f32.mrf.mxu0
      %v441 = vadd.f32 0.0, %v440
      %v442 = vpop.f32.mrf.mxu0
      %443 = vmatprep.mubr.f32.mxu0 0.0
      %444 = vmatmul.mubr.f32.gmra.mxu0 %v240
      %v445 = vpop.f32.mrf.mxu0
      %v446 = vadd.f32 0.0, %v445
      %v447 = vpop.f32.mrf.mxu0
      %448 = vmatprep.mubr.f32.mxu0 0.0
      %449 = vmatmul.mubr.f32.gmra.mxu0 %v243
      %v450 = vpop.f32.mrf.mxu0
      %v451 = vadd.f32 0.0, %v450
      %v452 = vpop.f32.mrf.mxu0
      %453 = vmatprep.mubr.f32.mxu0 0.0
      %454 = vmatmul.mubr.f32.gmra.mxu0 %v246
      %v455 = vpop.f32.mrf.mxu0
      %v456 = vadd.f32 0.0, %v455
      %v457 = vpop.f32.mrf.mxu0
      %458 = vmatprep.mubr.f32.mxu0 0.0
      %459 = vmatmul.mubr.f32.gmra.mxu0 %v249
      %v460 = vpop.f32.mrf.mxu0
      %v461 = vadd.f32 0.0, %v460
      %v462 = vpop.f32.mrf.mxu0
      %463 = vmatprep.mubr.f32.mxu0 0.0
      %464 = vmatmul.mubr.f32.gmra.mxu0 %v252
      %v465 = vpop.f32.mrf.mxu0
      %v466 = vadd.f32 0.0, %v465
      %v467 = vpop.f32.mrf.mxu0
      %468 = vmatprep.mubr.f32.mxu0 0.0
      %469 = vmatmul.mubr.f32.gmra.mxu0 %v255
      %v470 = vpop.f32.mrf.mxu0
      %v471 = vadd.f32 0.0, %v470
      %v472 = vpop.f32.mrf.mxu0
      %473 = vmatprep.mubr.f32.mxu0 0.0
      %474 = vmatmul.mubr.f32.gmra.mxu0 %v258
      %v475 = vpop.f32.mrf.mxu0
      %v476 = vadd.f32 0.0, %v475
      %v477 = vpop.f32.mrf.mxu0
      %478 = vmatprep.mubr.f32.mxu0 0.0
      %479 = vmatmul.mubr.f32.gmra.mxu0 %v261
      %v480 = vpop.f32.mrf.mxu0
      %v481 = vadd.f32 0.0, %v480
      %v482 = vpop.f32.mrf.mxu0
      %483 = vmatprep.mubr.f32.mxu0 0.0
      %484 = vmatmul.mubr.f32.gmra.mxu0 %v264
      %v485 = vpop.f32.mrf.mxu0
      %v486 = vadd.f32 0.0, %v485
      %v487 = vpop.f32.mrf.mxu0
      %488 = vmatprep.mubr.f32.mxu0 0.0
      %489 = vmatmul.mubr.f32.gmra.mxu0 %v267
      %v490 = vpop.f32.mrf.mxu0
      %v491 = vadd.f32 0.0, %v490
      %v492 = vpop.f32.mrf.mxu0
      %493 = vdwg.mxu0
      %v495 = vsel %vm172, %v21, 0
      %v498 = vsel %vm172, %v22, 0
      %v501 = vsel %vm172, %v23, 0
      %v504 = vsel %vm172, %v24, 0
      %v507 = vsel %vm172, %v25, 0
      %v510 = vsel %vm172, %v26, 0
      %v513 = vsel %vm172, %v27, 0
      %v516 = vsel %vm172, %v28, 0
      %v519 = vsel %vm172, %v29, 0
      %v522 = vsel %vm172, %v30, 0
      %v525 = vsel %vm172, %v31, 0
      %v528 = vsel %vm172, %v32, 0
      %v531 = vsel %vm172, %v33, 0
      %v534 = vsel %vm172, %v34, 0
      %v537 = vsel %vm172, %v35, 0
      %v540 = vsel %vm172, %v36, 0
      %v543 = vsel %vm172, %v37, 0
      %v546 = vsel %vm172, %v38, 0
      %v549 = vsel %vm172, %v39, 0
      %v552 = vsel %vm172, %v40, 0
      %v555 = vsel %vm172, %v41, 0
      %v558 = vsel %vm172, %v42, 0
      %v561 = vsel %vm172, %v43, 0
      %v564 = vsel %vm172, %v44, 0
      %v567 = vsel %vm172, %v45, 0
      %v570 = vsel %vm172, %v46, 0
      %v573 = vsel %vm172, %v47, 0
      %v576 = vsel %vm172, %v48, 0
      %v579 = vsel %vm172, %v49, 0
      %v582 = vsel %vm172, %v50, 0
      %v585 = vsel %vm172, %v51, 0
      %v588 = vsel %vm172, %v52, 0
      %590 = vmatprep.subr.mxu0 0.0
      %591 = vmatpush1.msra.mxu0 0.0
      %592 = vmatprep.subr.mxu0 0.0
      %593 = vmatpush1.msra.mxu0 0.0
      %594 = vmatprep.subr.mxu0 0.0
      %595 = vmatpush1.msra.mxu0 0.0
      %596 = vmatprep.subr.mxu0 0.0
      %597 = vmatpush1.msra.mxu0 0.0
      %598 = vmatprep.subr.mxu0 0.0
      %599 = vmatpush1.msra.mxu0 0.0
      %600 = vmatprep.subr.mxu0 0.0
      %601 = vmatpush1.msra.mxu0 0.0
      %602 = vmatprep.subr.mxu0 0.0
      %603 = vmatpush1.msra.mxu0 0.0
      %604 = vmatprep.subr.mxu0 0.0
      %605 = vmatpush1.msra.mxu0 0.0
      %606 = vmatprep.subr.mxu0 0.0
      %607 = vmatpush1.msra.mxu0 0.0
      %608 = vmatprep.subr.mxu0 0.0
      %609 = vmatpush1.msra.mxu0 0.0
      %610 = vmatprep.subr.mxu0 0.0
      %611 = vmatpush1.msra.mxu0 0.0
      %612 = vmatprep.subr.mxu0 0.0
      %613 = vmatpush1.msra.mxu0 0.0
      %614 = vmatprep.subr.mxu0 0.0
      %615 = vmatpush1.msra.mxu0 0.0
      %616 = vmatprep.subr.mxu0 0.0
      %617 = vmatpush1.msra.mxu0 0.0
      %618 = vmatprep.subr.mxu0 0.0
      %619 = vmatpush1.msra.mxu0 0.0
      %620 = vmatprep.subr.mxu0 0.0
      %621 = vmatpush1.msra.mxu0 %v168
      %622 = vmatprep.subr.mxu0 0.0
      %623 = vmatpush2.msra.mxu0 0.0
      %624 = vmatprep.subr.mxu0 0.0
      %625 = vmatpush2.msra.mxu0 0.0
      %626 = vmatprep.subr.mxu0 0.0
      %627 = vmatpush2.msra.mxu0 0.0
      %628 = vmatprep.subr.mxu0 0.0
      %629 = vmatpush2.msra.mxu0 0.0
      %630 = vmatprep.subr.mxu0 0.0
      %631 = vmatpush2.msra.mxu0 0.0
      %632 = vmatprep.subr.mxu0 0.0
      %633 = vmatpush2.msra.mxu0 0.0
      %634 = vmatprep.subr.mxu0 0.0
      %635 = vmatpush2.msra.mxu0 0.0
      %636 = vmatprep.subr.mxu0 0.0
      %637 = vmatpush2.msra.mxu0 0.0
      %638 = vmatprep.subr.mxu0 0.0
      %639 = vmatpush2.msra.mxu0 0.0
      %640 = vmatprep.subr.mxu0 0.0
      %641 = vmatpush2.msra.mxu0 0.0
      %642 = vmatprep.subr.mxu0 0.0
      %643 = vmatpush2.msra.mxu0 0.0
      %644 = vmatprep.subr.mxu0 0.0
      %645 = vmatpush2.msra.mxu0 0.0
      %646 = vmatprep.subr.mxu0 0.0
      %647 = vmatpush2.msra.mxu0 0.0
      %648 = vmatprep.subr.mxu0 0.0
      %649 = vmatpush2.msra.mxu0 0.0
      %650 = vmatprep.subr.mxu0 0.0
      %651 = vmatpush2.msra.mxu0 0.0
      %652 = vmatprep.subr.mxu0 0.0
      %653 = vmatpush2.msra.mxu0 0.0
      %654 = vmatprep.mubr.f32.mxu0 0.0
      %655 = vmatmul.mubr.f32.gmra.mxu0 %v495
      %v656 = vpop.f32.mrf.mxu0
      %v657 = vadd.f32 %v336, %v656
      %v658 = vpop.f32.mrf.mxu0
      %659 = vmatprep.mubr.f32.mxu0 0.0
      %660 = vmatmul.mubr.f32.gmra.mxu0 %v498
      %v661 = vpop.f32.mrf.mxu0
      %v662 = vadd.f32 %v341, %v661
      %v663 = vpop.f32.mrf.mxu0
      %664 = vmatprep.mubr.f32.mxu0 0.0
      %665 = vmatmul.mubr.f32.gmra.mxu0 %v501
      %v666 = vpop.f32.mrf.mxu0
      %v667 = vadd.f32 %v346, %v666
      %v668 = vpop.f32.mrf.mxu0
      %669 = vmatprep.mubr.f32.mxu0 0.0
      %670 = vmatmul.mubr.f32.gmra.mxu0 %v504
      %v671 = vpop.f32.mrf.mxu0
      %v672 = vadd.f32 %v351, %v671
      %v673 = vpop.f32.mrf.mxu0
      %674 = vmatprep.mubr.f32.mxu0 0.0
      %675 = vmatmul.mubr.f32.gmra.mxu0 %v507
      %v676 = vpop.f32.mrf.mxu0
      %v677 = vadd.f32 %v356, %v676
      %v678 = vpop.f32.mrf.mxu0
      %679 = vmatprep.mubr.f32.mxu0 0.0
      %680 = vmatmul.mubr.f32.gmra.mxu0 %v510
      %v681 = vpop.f32.mrf.mxu0
      %v682 = vadd.f32 %v361, %v681
      %v683 = vpop.f32.mrf.mxu0
      %684 = vmatprep.mubr.f32.mxu0 0.0
      %685 = vmatmul.mubr.f32.gmra.mxu0 %v513
      %v686 = vpop.f32.mrf.mxu0
      %v687 = vadd.f32 %v366, %v686
      %v688 = vpop.f32.mrf.mxu0
      %689 = vmatprep.mubr.f32.mxu0 0.0
      %690 = vmatmul.mubr.f32.gmra.mxu0 %v516
      %v691 = vpop.f32.mrf.mxu0
      %v692 = vadd.f32 %v371, %v691
      %v693 = vpop.f32.mrf.mxu0
      %694 = vmatprep.mubr.f32.mxu0 0.0
      %695 = vmatmul.mubr.f32.gmra.mxu0 %v519
      %v696 = vpop.f32.mrf.mxu0
      %v697 = vadd.f32 %v376, %v696
      %v698 = vpop.f32.mrf.mxu0
      %699 = vmatprep.mubr.f32.mxu0 0.0
      %700 = vmatmul.mubr.f32.gmra.mxu0 %v522
      %v701 = vpop.f32.mrf.mxu0
      %v702 = vadd.f32 %v381, %v701
      %v703 = vpop.f32.mrf.mxu0
      %704 = vmatprep.mubr.f32.mxu0 0.0
      %705 = vmatmul.mubr.f32.gmra.mxu0 %v525
      %v706 = vpop.f32.mrf.mxu0
      %v707 = vadd.f32 %v386, %v706
      %v708 = vpop.f32.mrf.mxu0
      %709 = vmatprep.mubr.f32.mxu0 0.0
      %710 = vmatmul.mubr.f32.gmra.mxu0 %v528
      %v711 = vpop.f32.mrf.mxu0
      %v712 = vadd.f32 %v391, %v711
      %v713 = vpop.f32.mrf.mxu0
      %714 = vmatprep.mubr.f32.mxu0 0.0
      %715 = vmatmul.mubr.f32.gmra.mxu0 %v531
      %v716 = vpop.f32.mrf.mxu0
      %v717 = vadd.f32 %v396, %v716
      %v718 = vpop.f32.mrf.mxu0
      %719 = vmatprep.mubr.f32.mxu0 0.0
      %720 = vmatmul.mubr.f32.gmra.mxu0 %v534
      %v721 = vpop.f32.mrf.mxu0
      %v722 = vadd.f32 %v401, %v721
      %v723 = vpop.f32.mrf.mxu0
      %724 = vmatprep.mubr.f32.mxu0 0.0
      %725 = vmatmul.mubr.f32.gmra.mxu0 %v537
      %v726 = vpop.f32.mrf.mxu0
      %v727 = vadd.f32 %v406, %v726
      %v728 = vpop.f32.mrf.mxu0
      %729 = vmatprep.mubr.f32.mxu0 0.0
      %730 = vmatmul.mubr.f32.gmra.mxu0 %v540
      %v731 = vpop.f32.mrf.mxu0
      %v732 = vadd.f32 %v411, %v731
      %v733 = vpop.f32.mrf.mxu0
      %734 = vmatprep.mubr.f32.mxu0 0.0
      %735 = vmatmul.mubr.f32.gmra.mxu0 %v543
      %v736 = vpop.f32.mrf.mxu0
      %v737 = vadd.f32 %v416, %v736
      %v738 = vpop.f32.mrf.mxu0
      %739 = vmatprep.mubr.f32.mxu0 0.0
      %740 = vmatmul.mubr.f32.gmra.mxu0 %v546
      %v741 = vpop.f32.mrf.mxu0
      %v742 = vadd.f32 %v421, %v741
      %v743 = vpop.f32.mrf.mxu0
      %744 = vmatprep.mubr.f32.mxu0 0.0
      %745 = vmatmul.mubr.f32.gmra.mxu0 %v549
      %v746 = vpop.f32.mrf.mxu0
      %v747 = vadd.f32 %v426, %v746
      %v748 = vpop.f32.mrf.mxu0
      %749 = vmatprep.mubr.f32.mxu0 0.0
      %750 = vmatmul.mubr.f32.gmra.mxu0 %v552
      %v751 = vpop.f32.mrf.mxu0
      %v752 = vadd.f32 %v431, %v751
      %v753 = vpop.f32.mrf.mxu0
      %754 = vmatprep.mubr.f32.mxu0 0.0
      %755 = vmatmul.mubr.f32.gmra.mxu0 %v555
      %v756 = vpop.f32.mrf.mxu0
      %v757 = vadd.f32 %v436, %v756
      %v758 = vpop.f32.mrf.mxu0
      %759 = vmatprep.mubr.f32.mxu0 0.0
      %760 = vmatmul.mubr.f32.gmra.mxu0 %v558
      %v761 = vpop.f32.mrf.mxu0
      %v762 = vadd.f32 %v441, %v761
      %v763 = vpop.f32.mrf.mxu0
      %764 = vmatprep.mubr.f32.mxu0 0.0
      %765 = vmatmul.mubr.f32.gmra.mxu0 %v561
      %v766 = vpop.f32.mrf.mxu0
      %v767 = vadd.f32 %v446, %v766
      %v768 = vpop.f32.mrf.mxu0
      %769 = vmatprep.mubr.f32.mxu0 0.0
      %770 = vmatmul.mubr.f32.gmra.mxu0 %v564
      %v771 = vpop.f32.mrf.mxu0
      %v772 = vadd.f32 %v451, %v771
      %v773 = vpop.f32.mrf.mxu0
      %774 = vmatprep.mubr.f32.mxu0 0.0
      %775 = vmatmul.mubr.f32.gmra.mxu0 %v567
      %v776 = vpop.f32.mrf.mxu0
      %v777 = vadd.f32 %v456, %v776
      %v778 = vpop.f32.mrf.mxu0
      %779 = vmatprep.mubr.f32.mxu0 0.0
      %780 = vmatmul.mubr.f32.gmra.mxu0 %v570
      %v781 = vpop.f32.mrf.mxu0
      %v782 = vadd.f32 %v461, %v781
      %v783 = vpop.f32.mrf.mxu0
      %784 = vmatprep.mubr.f32.mxu0 0.0
      %785 = vmatmul.mubr.f32.gmra.mxu0 %v573
      %v786 = vpop.f32.mrf.mxu0
      %v787 = vadd.f32 %v466, %v786
      %v788 = vpop.f32.mrf.mxu0
      %789 = vmatprep.mubr.f32.mxu0 0.0
      %790 = vmatmul.mubr.f32.gmra.mxu0 %v576
      %v791 = vpop.f32.mrf.mxu0
      %v792 = vadd.f32 %v471, %v791
      %v793 = vpop.f32.mrf.mxu0
      %794 = vmatprep.mubr.f32.mxu0 0.0
      %795 = vmatmul.mubr.f32.gmra.mxu0 %v579
      %v796 = vpop.f32.mrf.mxu0
      %v797 = vadd.f32 %v476, %v796
      %v798 = vpop.f32.mrf.mxu0
      %799 = vmatprep.mubr.f32.mxu0 0.0
      %800 = vmatmul.mubr.f32.gmra.mxu0 %v582
      %v801 = vpop.f32.mrf.mxu0
      %v802 = vadd.f32 %v481, %v801
      %v803 = vpop.f32.mrf.mxu0
      %804 = vmatprep.mubr.f32.mxu0 0.0
      %805 = vmatmul.mubr.f32.gmra.mxu0 %v585
      %v806 = vpop.f32.mrf.mxu0
      %v807 = vadd.f32 %v486, %v806
      %v808 = vpop.f32.mrf.mxu0
      %809 = vmatprep.mubr.f32.mxu0 0.0
      %810 = vmatmul.mubr.f32.gmra.mxu0 %v588
      %v811 = vpop.f32.mrf.mxu0
      %v812 = vadd.f32 %v491, %v811
      %v813 = vpop.f32.mrf.mxu0
      %814 = vdwg.mxu0
      %s815 = sadd.s32 %s166, 32
      %s816 = scalar_lea.vmem %s0, %s815
      %v817 = vld [vmem:[%s816] sm:$0xff]
      %v819 = vsel %vm172, %v87, 0
      %v822 = vsel %vm172, %v88, 0
      %v825 = vsel %vm172, %v89, 0
      %v828 = vsel %vm172, %v90, 0
      %v831 = vsel %vm172, %v91, 0
      %v834 = vsel %vm172, %v92, 0
      %v837 = vsel %vm172, %v93, 0
      %v840 = vsel %vm172, %v94, 0
      %v843 = vsel %vm172, %v95, 0
      %v846 = vsel %vm172, %v96, 0
      %v849 = vsel %vm172, %v97, 0
      %v852 = vsel %vm172, %v98, 0
      %v855 = vsel %vm172, %v99, 0
      %v858 = vsel %vm172, %v100, 0
      %v861 = vsel %vm172, %v101, 0
      %v864 = vsel %vm172, %v102, 0
      %v867 = vsel %vm172, %v103, 0
      %v870 = vsel %vm172, %v104, 0
      %v873 = vsel %vm172, %v105, 0
      %v876 = vsel %vm172, %v106, 0
      %v879 = vsel %vm172, %v107, 0
      %v882 = vsel %vm172, %v108, 0
      %v885 = vsel %vm172, %v109, 0
      %v888 = vsel %vm172, %v110, 0
      %v891 = vsel %vm172, %v111, 0
      %v894 = vsel %vm172, %v112, 0
      %v897 = vsel %vm172, %v113, 0
      %v900 = vsel %vm172, %v114, 0
      %v903 = vsel %vm172, %v115, 0
      %v906 = vsel %vm172, %v116, 0
      %v909 = vsel %vm172, %v117, 0
      %v912 = vsel %vm172, %v118, 0
      %914 = vmatprep.subr.mxu0 0.0
      %915 = vmatpush1.msra.mxu0 0.0
      %916 = vmatprep.subr.mxu0 0.0
      %917 = vmatpush1.msra.mxu0 0.0
      %918 = vmatprep.subr.mxu0 0.0
      %919 = vmatpush1.msra.mxu0 0.0
      %920 = vmatprep.subr.mxu0 0.0
      %921 = vmatpush1.msra.mxu0 0.0
      %922 = vmatprep.subr.mxu0 0.0
      %923 = vmatpush1.msra.mxu0 0.0
      %924 = vmatprep.subr.mxu0 0.0
      %925 = vmatpush1.msra.mxu0 0.0
      %926 = vmatprep.subr.mxu0 0.0
      %927 = vmatpush1.msra.mxu0 0.0
      %928 = vmatprep.subr.mxu0 0.0
      %929 = vmatpush1.msra.mxu0 0.0
      %930 = vmatprep.subr.mxu0 0.0
      %931 = vmatpush1.msra.mxu0 0.0
      %932 = vmatprep.subr.mxu0 0.0
      %933 = vmatpush1.msra.mxu0 0.0
      %934 = vmatprep.subr.mxu0 0.0
      %935 = vmatpush1.msra.mxu0 0.0
      %936 = vmatprep.subr.mxu0 0.0
      %937 = vmatpush1.msra.mxu0 0.0
      %938 = vmatprep.subr.mxu0 0.0
      %939 = vmatpush1.msra.mxu0 0.0
      %940 = vmatprep.subr.mxu0 0.0
      %941 = vmatpush1.msra.mxu0 0.0
      %942 = vmatprep.subr.mxu0 0.0
      %943 = vmatpush1.msra.mxu0 0.0
      %944 = vmatprep.subr.mxu0 0.0
      %945 = vmatpush1.msra.mxu0 %v817
      %946 = vmatprep.subr.mxu0 0.0
      %947 = vmatpush2.msra.mxu0 0.0
      %948 = vmatprep.subr.mxu0 0.0
      %949 = vmatpush2.msra.mxu0 0.0
      %950 = vmatprep.subr.mxu0 0.0
      %951 = vmatpush2.msra.mxu0 0.0
      %952 = vmatprep.subr.mxu0 0.0
      %953 = vmatpush2.msra.mxu0 0.0
      %954 = vmatprep.subr.mxu0 0.0
      %955 = vmatpush2.msra.mxu0 0.0
      %956 = vmatprep.subr.mxu0 0.0
      %957 = vmatpush2.msra.mxu0 0.0
      %958 = vmatprep.subr.mxu0 0.0
      %959 = vmatpush2.msra.mxu0 0.0
      %960 = vmatprep.subr.mxu0 0.0
      %961 = vmatpush2.msra.mxu0 0.0
      %962 = vmatprep.subr.mxu0 0.0
      %963 = vmatpush2.msra.mxu0 0.0
      %964 = vmatprep.subr.mxu0 0.0
      %965 = vmatpush2.msra.mxu0 0.0
      %966 = vmatprep.subr.mxu0 0.0
      %967 = vmatpush2.msra.mxu0 0.0
      %968 = vmatprep.subr.mxu0 0.0
      %969 = vmatpush2.msra.mxu0 0.0
      %970 = vmatprep.subr.mxu0 0.0
      %971 = vmatpush2.msra.mxu0 0.0
      %972 = vmatprep.subr.mxu0 0.0
      %973 = vmatpush2.msra.mxu0 0.0
      %974 = vmatprep.subr.mxu0 0.0
      %975 = vmatpush2.msra.mxu0 0.0
      %976 = vmatprep.subr.mxu0 0.0
      %977 = vmatpush2.msra.mxu0 0.0
      %978 = vmatprep.mubr.f32.mxu0 0.0
      %979 = vmatmul.mubr.f32.gmra.mxu0 %v819
      %v980 = vpop.f32.mrf.mxu0
      %v981 = vadd.f32 0.0, %v980
      %v982 = vpop.f32.mrf.mxu0
      %983 = vmatprep.mubr.f32.mxu0 0.0
      %984 = vmatmul.mubr.f32.gmra.mxu0 %v822
      %v985 = vpop.f32.mrf.mxu0
      %v986 = vadd.f32 0.0, %v985
      %v987 = vpop.f32.mrf.mxu0
      %988 = vmatprep.mubr.f32.mxu0 0.0
      %989 = vmatmul.mubr.f32.gmra.mxu0 %v825
      %v990 = vpop.f32.mrf.mxu0
      %v991 = vadd.f32 0.0, %v990
      %v992 = vpop.f32.mrf.mxu0
      %993 = vmatprep.mubr.f32.mxu0 0.0
      %994 = vmatmul.mubr.f32.gmra.mxu0 %v828
      %v995 = vpop.f32.mrf.mxu0
      %v996 = vadd.f32 0.0, %v995
      %v997 = vpop.f32.mrf.mxu0
      %998 = vmatprep.mubr.f32.mxu0 0.0
      %999 = vmatmul.mubr.f32.gmra.mxu0 %v831
      %v1000 = vpop.f32.mrf.mxu0
      %v1001 = vadd.f32 0.0, %v1000
      %v1002 = vpop.f32.mrf.mxu0
      %1003 = vmatprep.mubr.f32.mxu0 0.0
      %1004 = vmatmul.mubr.f32.gmra.mxu0 %v834
      %v1005 = vpop.f32.mrf.mxu0
      %v1006 = vadd.f32 0.0, %v1005
      %v1007 = vpop.f32.mrf.mxu0
      %1008 = vmatprep.mubr.f32.mxu0 0.0
      %1009 = vmatmul.mubr.f32.gmra.mxu0 %v837
      %v1010 = vpop.f32.mrf.mxu0
      %v1011 = vadd.f32 0.0, %v1010
      %v1012 = vpop.f32.mrf.mxu0
      %1013 = vmatprep.mubr.f32.mxu0 0.0
      %1014 = vmatmul.mubr.f32.gmra.mxu0 %v840
      %v1015 = vpop.f32.mrf.mxu0
      %v1016 = vadd.f32 0.0, %v1015
      %v1017 = vpop.f32.mrf.mxu0
      %1018 = vmatprep.mubr.f32.mxu0 0.0
      %1019 = vmatmul.mubr.f32.gmra.mxu0 %v843
      %v1020 = vpop.f32.mrf.mxu0
      %v1021 = vadd.f32 0.0, %v1020
      %v1022 = vpop.f32.mrf.mxu0
      %1023 = vmatprep.mubr.f32.mxu0 0.0
      %1024 = vmatmul.mubr.f32.gmra.mxu0 %v846
      %v1025 = vpop.f32.mrf.mxu0
      %v1026 = vadd.f32 0.0, %v1025
      %v1027 = vpop.f32.mrf.mxu0
      %1028 = vmatprep.mubr.f32.mxu0 0.0
      %1029 = vmatmul.mubr.f32.gmra.mxu0 %v849
      %v1030 = vpop.f32.mrf.mxu0
      %v1031 = vadd.f32 0.0, %v1030
      %v1032 = vpop.f32.mrf.mxu0
      %1033 = vmatprep.mubr.f32.mxu0 0.0
      %1034 = vmatmul.mubr.f32.gmra.mxu0 %v852
      %v1035 = vpop.f32.mrf.mxu0
      %v1036 = vadd.f32 0.0, %v1035
      %v1037 = vpop.f32.mrf.mxu0
      %1038 = vmatprep.mubr.f32.mxu0 0.0
      %1039 = vmatmul.mubr.f32.gmra.mxu0 %v855
      %v1040 = vpop.f32.mrf.mxu0
      %v1041 = vadd.f32 0.0, %v1040
      %v1042 = vpop.f32.mrf.mxu0
      %1043 = vmatprep.mubr.f32.mxu0 0.0
      %1044 = vmatmul.mubr.f32.gmra.mxu0 %v858
      %v1045 = vpop.f32.mrf.mxu0
      %v1046 = vadd.f32 0.0, %v1045
      %v1047 = vpop.f32.mrf.mxu0
      %1048 = vmatprep.mubr.f32.mxu0 0.0
      %1049 = vmatmul.mubr.f32.gmra.mxu0 %v861
      %v1050 = vpop.f32.mrf.mxu0
      %v1051 = vadd.f32 0.0, %v1050
      %v1052 = vpop.f32.mrf.mxu0
      %1053 = vmatprep.mubr.f32.mxu0 0.0
      %1054 = vmatmul.mubr.f32.gmra.mxu0 %v864
      %v1055 = vpop.f32.mrf.mxu0
      %v1056 = vadd.f32 0.0, %v1055
      %v1057 = vpop.f32.mrf.mxu0
      %1058 = vmatprep.mubr.f32.mxu0 0.0
      %1059 = vmatmul.mubr.f32.gmra.mxu0 %v867
      %v1060 = vpop.f32.mrf.mxu0
      %v1061 = vadd.f32 0.0, %v1060
      %v1062 = vpop.f32.mrf.mxu0
      %1063 = vmatprep.mubr.f32.mxu0 0.0
      %1064 = vmatmul.mubr.f32.gmra.mxu0 %v870
      %v1065 = vpop.f32.mrf.mxu0
      %v1066 = vadd.f32 0.0, %v1065
      %v1067 = vpop.f32.mrf.mxu0
      %1068 = vmatprep.mubr.f32.mxu0 0.0
      %1069 = vmatmul.mubr.f32.gmra.mxu0 %v873
      %v1070 = vpop.f32.mrf.mxu0
      %v1071 = vadd.f32 0.0, %v1070
      %v1072 = vpop.f32.mrf.mxu0
      %1073 = vmatprep.mubr.f32.mxu0 0.0
      %1074 = vmatmul.mubr.f32.gmra.mxu0 %v876
      %v1075 = vpop.f32.mrf.mxu0
      %v1076 = vadd.f32 0.0, %v1075
      %v1077 = vpop.f32.mrf.mxu0
      %1078 = vmatprep.mubr.f32.mxu0 0.0
      %1079 = vmatmul.mubr.f32.gmra.mxu0 %v879
      %v1080 = vpop.f32.mrf.mxu0
      %v1081 = vadd.f32 0.0, %v1080
      %v1082 = vpop.f32.mrf.mxu0
      %1083 = vmatprep.mubr.f32.mxu0 0.0
      %1084 = vmatmul.mubr.f32.gmra.mxu0 %v882
      %v1085 = vpop.f32.mrf.mxu0
      %v1086 = vadd.f32 0.0, %v1085
      %v1087 = vpop.f32.mrf.mxu0
      %1088 = vmatprep.mubr.f32.mxu0 0.0
      %1089 = vmatmul.mubr.f32.gmra.mxu0 %v885
      %v1090 = vpop.f32.mrf.mxu0
      %v1091 = vadd.f32 0.0, %v1090
      %v1092 = vpop.f32.mrf.mxu0
      %1093 = vmatprep.mubr.f32.mxu0 0.0
      %1094 = vmatmul.mubr.f32.gmra.mxu0 %v888
      %v1095 = vpop.f32.mrf.mxu0
      %v1096 = vadd.f32 0.0, %v1095
      %v1097 = vpop.f32.mrf.mxu0
      %1098 = vmatprep.mubr.f32.mxu0 0.0
      %1099 = vmatmul.mubr.f32.gmra.mxu0 %v891
      %v1100 = vpop.f32.mrf.mxu0
      %v1101 = vadd.f32 0.0, %v1100
      %v1102 = vpop.f32.mrf.mxu0
      %1103 = vmatprep.mubr.f32.mxu0 0.0
      %1104 = vmatmul.mubr.f32.gmra.mxu0 %v894
      %v1105 = vpop.f32.mrf.mxu0
      %v1106 = vadd.f32 0.0, %v1105
      %v1107 = vpop.f32.mrf.mxu0
      %1108 = vmatprep.mubr.f32.mxu0 0.0
      %1109 = vmatmul.mubr.f32.gmra.mxu0 %v897
      %v1110 = vpop.f32.mrf.mxu0
      %v1111 = vadd.f32 0.0, %v1110
      %v1112 = vpop.f32.mrf.mxu0
      %1113 = vmatprep.mubr.f32.mxu0 0.0
      %1114 = vmatmul.mubr.f32.gmra.mxu0 %v900
      %v1115 = vpop.f32.mrf.mxu0
      %v1116 = vadd.f32 0.0, %v1115
      %v1117 = vpop.f32.mrf.mxu0
      %1118 = vmatprep.mubr.f32.mxu0 0.0
      %1119 = vmatmul.mubr.f32.gmra.mxu0 %v903
      %v1120 = vpop.f32.mrf.mxu0
      %v1121 = vadd.f32 0.0, %v1120
      %v1122 = vpop.f32.mrf.mxu0
      %1123 = vmatprep.mubr.f32.mxu0 0.0
      %1124 = vmatmul.mubr.f32.gmra.mxu0 %v906
      %v1125 = vpop.f32.mrf.mxu0
      %v1126 = vadd.f32 0.0, %v1125
      %v1127 = vpop.f32.mrf.mxu0
      %1128 = vmatprep.mubr.f32.mxu0 0.0
      %1129 = vmatmul.mubr.f32.gmra.mxu0 %v909
      %v1130 = vpop.f32.mrf.mxu0
      %v1131 = vadd.f32 0.0, %v1130
      %v1132 = vpop.f32.mrf.mxu0
      %1133 = vmatprep.mubr.f32.mxu0 0.0
      %1134 = vmatmul.mubr.f32.gmra.mxu0 %v912
      %v1135 = vpop.f32.mrf.mxu0
      %v1136 = vadd.f32 0.0, %v1135
      %v1137 = vpop.f32.mrf.mxu0
      %1138 = vdwg.mxu0
      %v1139 = vadd.f32 %v657, %v981
      %v1140 = vadd.f32 %v662, %v986
      %v1141 = vadd.f32 %v667, %v991
      %v1142 = vadd.f32 %v672, %v996
      %v1143 = vadd.f32 %v677, %v1001
      %v1144 = vadd.f32 %v682, %v1006
      %v1145 = vadd.f32 %v687, %v1011
      %v1146 = vadd.f32 %v692, %v1016
      %v1147 = vadd.f32 %v697, %v1021
      %v1148 = vadd.f32 %v702, %v1026
      %v1149 = vadd.f32 %v707, %v1031
      %v1150 = vadd.f32 %v712, %v1036
      %v1151 = vadd.f32 %v717, %v1041
      %v1152 = vadd.f32 %v722, %v1046
      %v1153 = vadd.f32 %v727, %v1051
      %v1154 = vadd.f32 %v732, %v1056
      %v1155 = vadd.f32 %v737, %v1061
      %v1156 = vadd.f32 %v742, %v1066
      %v1157 = vadd.f32 %v747, %v1071
      %v1158 = vadd.f32 %v752, %v1076
      %v1159 = vadd.f32 %v757, %v1081
      %v1160 = vadd.f32 %v762, %v1086
      %v1161 = vadd.f32 %v767, %v1091
      %v1162 = vadd.f32 %v772, %v1096
      %v1163 = vadd.f32 %v777, %v1101
      %v1164 = vadd.f32 %v782, %v1106
      %v1165 = vadd.f32 %v787, %v1111
      %v1166 = vadd.f32 %v792, %v1116
      %v1167 = vadd.f32 %v797, %v1121
      %v1168 = vadd.f32 %v802, %v1126
      %v1169 = vadd.f32 %v807, %v1131
      %v1170 = vadd.f32 %v812, %v1136
      %1172 = vset.pattern.permute.xlu0 0
      %1173 = vperm.xlu0 %1172, %v119
      %v1174 = vpop.permute.xlu0 %1173
      %1177 = vset.pattern.permute.xlu0 0
      %1178 = vperm.xlu0 %1177, %v120
      %v1179 = vpop.permute.xlu0 %1178
      %1182 = vset.pattern.permute.xlu0 0
      %1183 = vperm.xlu0 %1182, %v121
      %v1184 = vpop.permute.xlu0 %1183
      %1187 = vset.pattern.permute.xlu0 0
      %1188 = vperm.xlu0 %1187, %v122
      %v1189 = vpop.permute.xlu0 %1188
      %1192 = vset.pattern.permute.xlu0 0
      %1193 = vperm.xlu0 %1192, %v123
      %v1194 = vpop.permute.xlu0 %1193
      %1197 = vset.pattern.permute.xlu0 0
      %1198 = vperm.xlu0 %1197, %v124
      %v1199 = vpop.permute.xlu0 %1198
      %1202 = vset.pattern.permute.xlu0 0
      %1203 = vperm.xlu0 %1202, %v125
      %v1204 = vpop.permute.xlu0 %1203
      %1207 = vset.pattern.permute.xlu0 0
      %1208 = vperm.xlu0 %1207, %v126
      %v1209 = vpop.permute.xlu0 %1208
      %1212 = vset.pattern.permute.xlu0 0
      %1213 = vperm.xlu0 %1212, %v127
      %v1214 = vpop.permute.xlu0 %1213
      %1217 = vset.pattern.permute.xlu0 0
      %1218 = vperm.xlu0 %1217, %v128
      %v1219 = vpop.permute.xlu0 %1218
      %1222 = vset.pattern.permute.xlu0 0
      %1223 = vperm.xlu0 %1222, %v129
      %v1224 = vpop.permute.xlu0 %1223
      %1227 = vset.pattern.permute.xlu0 0
      %1228 = vperm.xlu0 %1227, %v130
      %v1229 = vpop.permute.xlu0 %1228
      %1232 = vset.pattern.permute.xlu0 0
      %1233 = vperm.xlu0 %1232, %v131
      %v1234 = vpop.permute.xlu0 %1233
      %1237 = vset.pattern.permute.xlu0 0
      %1238 = vperm.xlu0 %1237, %v132
      %v1239 = vpop.permute.xlu0 %1238
      %1242 = vset.pattern.permute.xlu0 0
      %1243 = vperm.xlu0 %1242, %v133
      %v1244 = vpop.permute.xlu0 %1243
      %1247 = vset.pattern.permute.xlu0 0
      %1248 = vperm.xlu0 %1247, %v134
      %v1249 = vpop.permute.xlu0 %1248
      %1252 = vset.pattern.permute.xlu0 0
      %1253 = vperm.xlu0 %1252, %v135
      %v1254 = vpop.permute.xlu0 %1253
      %1257 = vset.pattern.permute.xlu0 0
      %1258 = vperm.xlu0 %1257, %v136
      %v1259 = vpop.permute.xlu0 %1258
      %1262 = vset.pattern.permute.xlu0 0
      %1263 = vperm.xlu0 %1262, %v137
      %v1264 = vpop.permute.xlu0 %1263
      %1267 = vset.pattern.permute.xlu0 0
      %1268 = vperm.xlu0 %1267, %v138
      %v1269 = vpop.permute.xlu0 %1268
      %1272 = vset.pattern.permute.xlu0 0
      %1273 = vperm.xlu0 %1272, %v139
      %v1274 = vpop.permute.xlu0 %1273
      %1277 = vset.pattern.permute.xlu0 0
      %1278 = vperm.xlu0 %1277, %v140
      %v1279 = vpop.permute.xlu0 %1278
      %1282 = vset.pattern.permute.xlu0 0
      %1283 = vperm.xlu0 %1282, %v141
      %v1284 = vpop.permute.xlu0 %1283
      %1287 = vset.pattern.permute.xlu0 0
      %1288 = vperm.xlu0 %1287, %v142
      %v1289 = vpop.permute.xlu0 %1288
      %1292 = vset.pattern.permute.xlu0 0
      %1293 = vperm.xlu0 %1292, %v143
      %v1294 = vpop.permute.xlu0 %1293
      %1297 = vset.pattern.permute.xlu0 0
      %1298 = vperm.xlu0 %1297, %v144
      %v1299 = vpop.permute.xlu0 %1298
      %1302 = vset.pattern.permute.xlu0 0
      %1303 = vperm.xlu0 %1302, %v145
      %v1304 = vpop.permute.xlu0 %1303
      %1307 = vset.pattern.permute.xlu0 0
      %1308 = vperm.xlu0 %1307, %v146
      %v1309 = vpop.permute.xlu0 %1308
      %1312 = vset.pattern.permute.xlu0 0
      %1313 = vperm.xlu0 %1312, %v147
      %v1314 = vpop.permute.xlu0 %1313
      %1317 = vset.pattern.permute.xlu0 0
      %1318 = vperm.xlu0 %1317, %v148
      %v1319 = vpop.permute.xlu0 %1318
      %1322 = vset.pattern.permute.xlu0 0
      %1323 = vperm.xlu0 %1322, %v149
      %v1324 = vpop.permute.xlu0 %1323
      %1327 = vset.pattern.permute.xlu0 0
      %1328 = vperm.xlu0 %1327, %v150
      %v1329 = vpop.permute.xlu0 %1328
      %v1331 = vadd.f32 %v1139, %v1174
      %v1332 = vadd.f32 %v1140, %v1179
      %v1333 = vadd.f32 %v1141, %v1184
      %v1334 = vadd.f32 %v1142, %v1189
      %v1335 = vadd.f32 %v1143, %v1194
      %v1336 = vadd.f32 %v1144, %v1199
      %v1337 = vadd.f32 %v1145, %v1204
      %v1338 = vadd.f32 %v1146, %v1209
      %v1339 = vadd.f32 %v1147, %v1214
      %v1340 = vadd.f32 %v1148, %v1219
      %v1341 = vadd.f32 %v1149, %v1224
      %v1342 = vadd.f32 %v1150, %v1229
      %v1343 = vadd.f32 %v1151, %v1234
      %v1344 = vadd.f32 %v1152, %v1239
      %v1345 = vadd.f32 %v1153, %v1244
      %v1346 = vadd.f32 %v1154, %v1249
      %v1347 = vadd.f32 %v1155, %v1254
      %v1348 = vadd.f32 %v1156, %v1259
      %v1349 = vadd.f32 %v1157, %v1264
      %v1350 = vadd.f32 %v1158, %v1269
      %v1351 = vadd.f32 %v1159, %v1274
      %v1352 = vadd.f32 %v1160, %v1279
      %v1353 = vadd.f32 %v1161, %v1284
      %v1354 = vadd.f32 %v1162, %v1289
      %v1355 = vadd.f32 %v1163, %v1294
      %v1356 = vadd.f32 %v1164, %v1299
      %v1357 = vadd.f32 %v1165, %v1304
      %v1358 = vadd.f32 %v1166, %v1309
      %v1359 = vadd.f32 %v1167, %v1314
      %v1360 = vadd.f32 %v1168, %v1319
      %v1361 = vadd.f32 %v1169, %v1324
      %v1362 = vadd.f32 %v1170, %v1329
      %v1363 = vmax.f32 %v1331, 0.0
      %v1364 = vmax.f32 %v1332, 0.0
      %v1365 = vmax.f32 %v1333, 0.0
      %v1366 = vmax.f32 %v1334, 0.0
      %v1367 = vmax.f32 %v1335, 0.0
      %v1368 = vmax.f32 %v1336, 0.0
      %v1369 = vmax.f32 %v1337, 0.0
      %v1370 = vmax.f32 %v1338, 0.0
      %v1371 = vmax.f32 %v1339, 0.0
      %v1372 = vmax.f32 %v1340, 0.0
      %v1373 = vmax.f32 %v1341, 0.0
      %v1374 = vmax.f32 %v1342, 0.0
      %v1375 = vmax.f32 %v1343, 0.0
      %v1376 = vmax.f32 %v1344, 0.0
      %v1377 = vmax.f32 %v1345, 0.0
      %v1378 = vmax.f32 %v1346, 0.0
      %v1379 = vmax.f32 %v1347, 0.0
      %v1380 = vmax.f32 %v1348, 0.0
      %v1381 = vmax.f32 %v1349, 0.0
      %v1382 = vmax.f32 %v1350, 0.0
      %v1383 = vmax.f32 %v1351, 0.0
      %v1384 = vmax.f32 %v1352, 0.0
      %v1385 = vmax.f32 %v1353, 0.0
      %v1386 = vmax.f32 %v1354, 0.0
      %v1387 = vmax.f32 %v1355, 0.0
      %v1388 = vmax.f32 %v1356, 0.0
      %v1389 = vmax.f32 %v1357, 0.0
      %v1390 = vmax.f32 %v1358, 0.0
      %v1391 = vmax.f32 %v1359, 0.0
      %v1392 = vmax.f32 %v1360, 0.0
      %v1393 = vmax.f32 %v1361, 0.0
      %v1394 = vmax.f32 %v1362, 0.0
      %1395 = vmatprep.subr.mxu0 0.0
      %1396 = vmatpush1.msra.mxu0 %v1378
      %1397 = vmatprep.subr.mxu0 0.0
      %1398 = vmatpush1.msra.mxu0 %v1377
      %1399 = vmatprep.subr.mxu0 0.0
      %1400 = vmatpush1.msra.mxu0 %v1376
      %1401 = vmatprep.subr.mxu0 0.0
      %1402 = vmatpush1.msra.mxu0 %v1375
      %1403 = vmatprep.subr.mxu0 0.0
      %1404 = vmatpush1.msra.mxu0 %v1374
      %1405 = vmatprep.subr.mxu0 0.0
      %1406 = vmatpush1.msra.mxu0 %v1373
      %1407 = vmatprep.subr.mxu0 0.0
      %1408 = vmatpush1.msra.mxu0 %v1372
      %1409 = vmatprep.subr.mxu0 0.0
      %1410 = vmatpush1.msra.mxu0 %v1371
      %1411 = vmatprep.subr.mxu0 0.0
      %1412 = vmatpush1.msra.mxu0 %v1370
      %1413 = vmatprep.subr.mxu0 0.0
      %1414 = vmatpush1.msra.mxu0 %v1369
      %1415 = vmatprep.subr.mxu0 0.0
      %1416 = vmatpush1.msra.mxu0 %v1368
      %1417 = vmatprep.subr.mxu0 0.0
      %1418 = vmatpush1.msra.mxu0 %v1367
      %1419 = vmatprep.subr.mxu0 0.0
      %1420 = vmatpush1.msra.mxu0 %v1366
      %1421 = vmatprep.subr.mxu0 0.0
      %1422 = vmatpush1.msra.mxu0 %v1365
      %1423 = vmatprep.subr.mxu0 0.0
      %1424 = vmatpush1.msra.mxu0 %v1364
      %1425 = vmatprep.subr.mxu0 0.0
      %1426 = vmatpush1.msra.mxu0 %v1363
      %1427 = vmatprep.subr.mxu0 0.0
      %1428 = vmatpush2.msra.mxu0 %v1394
      %1429 = vmatprep.subr.mxu0 0.0
      %1430 = vmatpush2.msra.mxu0 %v1393
      %1431 = vmatprep.subr.mxu0 0.0
      %1432 = vmatpush2.msra.mxu0 %v1392
      %1433 = vmatprep.subr.mxu0 0.0
      %1434 = vmatpush2.msra.mxu0 %v1391
      %1435 = vmatprep.subr.mxu0 0.0
      %1436 = vmatpush2.msra.mxu0 %v1390
      %1437 = vmatprep.subr.mxu0 0.0
      %1438 = vmatpush2.msra.mxu0 %v1389
      %1439 = vmatprep.subr.mxu0 0.0
      %1440 = vmatpush2.msra.mxu0 %v1388
      %1441 = vmatprep.subr.mxu0 0.0
      %1442 = vmatpush2.msra.mxu0 %v1387
      %1443 = vmatprep.subr.mxu0 0.0
      %1444 = vmatpush2.msra.mxu0 %v1386
      %1445 = vmatprep.subr.mxu0 0.0
      %1446 = vmatpush2.msra.mxu0 %v1385
      %1447 = vmatprep.subr.mxu0 0.0
      %1448 = vmatpush2.msra.mxu0 %v1384
      %1449 = vmatprep.subr.mxu0 0.0
      %1450 = vmatpush2.msra.mxu0 %v1383
      %1451 = vmatprep.subr.mxu0 0.0
      %1452 = vmatpush2.msra.mxu0 %v1382
      %1453 = vmatprep.subr.mxu0 0.0
      %1454 = vmatpush2.msra.mxu0 %v1381
      %1455 = vmatprep.subr.mxu0 0.0
      %1456 = vmatpush2.msra.mxu0 %v1380
      %1457 = vmatprep.subr.mxu0 0.0
      %1458 = vmatpush2.msra.mxu0 %v1379
      %1459 = vmatprep.mubr.f32.mxu0 %v152
      %1460 = vmatmul.mubr.f32.gmra.mxu0 %v151
      %v1461 = vpop.f32.mrf.mxu0
      %v1462 = vadd.f32 0.0, %v1461
      %v1463 = vpop.f32.mrf.mxu0
      %1464 = vmatprep.mubr.f32.mxu0 %v154
      %1465 = vmatmul.mubr.f32.gmra.mxu0 %v153
      %v1466 = vpop.f32.mrf.mxu0
      %v1467 = vadd.f32 0.0, %v1466
      %v1468 = vpop.f32.mrf.mxu0
      %1469 = vmatprep.mubr.f32.mxu0 %v156
      %1470 = vmatmul.mubr.f32.gmra.mxu0 %v155
      %v1471 = vpop.f32.mrf.mxu0
      %v1472 = vadd.f32 0.0, %v1471
      %v1473 = vpop.f32.mrf.mxu0
      %1474 = vdwg.mxu0
      %1476 = vset.pattern.permute.xlu0 0
      %1477 = vperm.xlu0 %1476, %v157
      %v1478 = vpop.permute.xlu0 %1477
      %1481 = vset.pattern.permute.xlu0 0
      %1482 = vperm.xlu0 %1481, %v158
      %v1483 = vpop.permute.xlu0 %1482
      %1486 = vset.pattern.permute.xlu0 0
      %1487 = vperm.xlu0 %1486, %v159
      %v1488 = vpop.permute.xlu0 %1487
      %vm1490 = vcmp.gt.f32.partialorder %v1462, %v1478
      %vm1491 = vcmp.gt.f32.partialorder %v1467, %v1483
      %vm1492 = vcmp.gt.f32.partialorder %v1472, %v1488
      %v1493 = vsel %vm1490, 0.0, 1.0
      %v1494 = vsel %vm1491, 0.0, 1.0
      %v1495 = vsel %vm1492, 0.0, 1.0
      %s1496 = scalar_lea.vmem [#allocation2], %s166
      %vm1497 = vcmask 130048
      %1498 = vst.msk [vmem:[%s1496] sm:$0xff] %vm1497, %v1493
      %s1499 = scalar_lea.vmem [#allocation2], %s169
      %1500 = vst.msk [vmem:[%s1499] sm:$0xff] %vm1497, %v1494
      %s1501 = scalar_lea.vmem [#allocation2], %s815
      %1502 = vst.msk [vmem:[%s1501] sm:$0xff] %vm1497, %v1495
    $region26: #{ghosts_detector.1} parent=1 // loop_footer
      %s165 = sadd.s32 1, %s161
    $region27: #{ghosts_detector.1} parent=1 // loop_footer_branch
      %160 = sbr.rel target = $region23
    $region28: #{ghosts_detector.1} parent=1 // loop_exit
      _
    // Predicated region
    $region29: #{ghosts_detector.1} parent=1 // pred_check
      _
    $region30: #{ghosts_detector.1} parent=1 // pred_check_branch
      %1504 = sbr.rel (0) target = $region32
    $region31: #{ghosts_detector.1} parent=1 // pred_region
      %s1506 = ssub.s32 768, 768
      %1507 = vsyncadd [#allocation3], %s1506
      %s1508 = sshll.u32 [#allocation2], 4
      %s1509 = int_to_ptr.vmem [resolvable:$true] %s1508
      %1514 = dma.vmem_to_hbm [thread:$0]  %s1509, 768, %s5, [#allocation3], 128, 128, 8
    $region32: #{ghosts_detector.1} parent=1 // pred_fallthru
      _
    // Predicated region
    $region33: #{ghosts_detector.1} parent=1 // pred_check
      _
    $region34: #{ghosts_detector.1} parent=1 // pred_check_branch
      %1516 = sbr.rel (0) target = $region36
    $region35: #{ghosts_detector.1} parent=1 // pred_region
      %1517 = dma.done [#allocation3], 768
    $region36: #{ghosts_detector.1} parent=1 // pred_fallthru
      _
    %1518 = vsyncpa [#allocation3], 1

</llo_original>
